<compile_context>
chip_gen: v7x
topology: tpu7x:2x2x1
jax: 0.10.0
libtpu: 0.0.40
codegen_flags: <defaults>
</compile_context>

<pallas_src>
import functools
import math

import jax
import jax.numpy as jnp
from jax import lax
from jax.experimental import pallas as pl
from jax.experimental.pallas import tpu as pltpu

N_BINS = 15
BIN_PAD = 128     # 15 bins padded up to one full lane width
ACC_ROWS = 8      # rows: [count, conf_hi, acc, conf_lo, 0...] -> one (8,128) tile
CHUNK = 512       # rows per inner fori_loop step (bounds live intermediates)
NUM_CORES = 2     # leading "parallel" grid axis; serializes (no-op) on 1-TC chips


def _round_up(x, m):
    return ((x + m - 1) // m) * m


def _vmem_capacity_bytes():
    try:
        info = pltpu.get_tpu_info()
        cap = getattr(info, "vmem_capacity_bytes", None)
        if cap:
            return int(cap)
    except Exception:
        pass
    return 64 << 20          # conservative (v7x-sized) fallback


def _per_buffer_budget(cap):
    # Per-pipeline-buffer byte budget for the logits+labels block.
    if cap >= (96 << 20):    # 128 MiB-class VMEM (v4 / v5e / v6e)
        return 20 << 20
    return 6 << 20           # 64 MiB-class VMEM (v7x)


def _row_bytes(c, itemsize):
    # Logits row lane-padded to a multiple of 128, plus the (tile_b, 1) int32
    # labels block which is lane-padded to 128 lanes (512 B/row).
    return _round_up(max(c, 1), 128) * itemsize + 128 * 4


def _choose_tile_b(n, c, itemsize, num_cores, cap):
    budget = _per_buffer_budget(cap)
    rows = max(budget // (2 * _row_bytes(c, itemsize)), 8)   # 2 pipeline buffers
    per_core = pl.cdiv(n, num_cores)
    if per_core <= rows:                     # whole per-core slice in one tile
        if per_core <= CHUNK:
            return max(_round_up(per_core, 8), 8)
        return _round_up(per_core, CHUNK)
    if rows >= CHUNK:
        return (rows // CHUNK) * CHUNK
    return max((rows // 8) * 8, 8)


def _chunk_for(tile_b):
    if tile_b <= CHUNK:
        return tile_b
    if tile_b % CHUNK == 0:
        return CHUNK
    return max(math.gcd(tile_b, CHUNK), 8)


def _ece_kernel(logits_ref, labels_ref, o_ref, *, n_total, n_bins,
                tile_b, chunk, tiles_per_core):
    core = pl.program_id(0)
    i = pl.program_id(1)

    @pl.when(i == 0)
    def _():
        o_ref[...] = jnp.zeros_like(o_ref)

    c = logits_ref.shape[1]
    n_chunks = tile_b // chunk

    # Bin boundaries from a lane iota; padded lanes get the empty (2, 2] bin.
    lane = lax.broadcasted_iota(jnp.int32, (1, BIN_PAD), 1)
    lane_f = lane.astype(jnp.float32)
    is_bin = lane < n_bins
    lowers = jnp.where(is_bin, lane_f / n_bins, 2.0)
    uppers = jnp.where(is_bin, (lane_f + 1.0) / n_bins, 2.0)

    # Global row index of this tile's first row (UNclamped block index, so rows
    # belonging to a duplicated / partial tail block are masked out below).
    tile_row0 = (core * tiles_per_core + i) * tile_b
    fcol = lax.broadcasted_iota(jnp.int32, (chunk, ACC_ROWS), 1)

    def chunk_body(s, stats_acc):
        r0 = pl.multiple_of(s * chunk, chunk)
        logits = logits_ref[pl.ds(r0, chunk), :].astype(jnp.float32)
        labels = labels_ref[pl.ds(r0, chunk), :].astype(jnp.int32)

        # max(softmax) = 1 / sum(exp(logits - max)): no (chunk, C) divide.
        m = jnp.max(logits, axis=1, keepdims=True)
        denom = jnp.sum(jnp.exp(logits - m), axis=1, keepdims=True)
        conf = 1.0 / denom                                    # exact, <= 1.0

        # argmax = first column equal to the row max (torch tie-break).
        col = lax.broadcasted_iota(jnp.int32, (chunk, c), 1)
        pred = jnp.min(jnp.where(logits == m, col, c), axis=1, keepdims=True)
        acc = (pred == labels).astype(jnp.float32)

        # Tail mask: rows at/past n_total contribute nothing.  conf = -1 falls
        # in no bin and also squashes NaN/garbage from undefined padded rows.
        row = lax.broadcasted_iota(jnp.int32, (chunk, 1), 0)
        valid = (tile_row0 + r0 + row) < n_total
        conf = jnp.where(valid, conf, -1.0)

        in_bin = jnp.logical_and(conf > lowers, conf <= uppers)
        in_bin = in_bin.astype(jnp.float32)                   # (chunk, BIN_PAD)

        # Bin histogram on the otherwise-idle MXU: stats = feats^T @ in_bin.
        # conf is split hi/lo so accuracy is preserved even under a bf16
        # single-pass f32 matmul (hi is bf16-exact; lo is ~2^-9 smaller).
        conf_hi = conf.astype(jnp.bfloat16).astype(jnp.float32)
        conf_lo = conf - conf_hi
        feats = jnp.where(fcol == 0, 1.0,
                jnp.where(fcol == 1, conf_hi,
                jnp.where(fcol == 2, acc,
                jnp.where(fcol == 3, conf_lo, 0.0))))         # (chunk, ACC_ROWS)
        stats = lax.dot_general(
            feats, in_bin, (((0,), (0,)), ((), ())),
            preferred_element_type=jnp.float32)               # (ACC_ROWS, BIN_PAD)
        return stats_acc + stats

    tile_stats = lax.fori_loop(
        0, n_chunks, chunk_body,
        jnp.zeros((ACC_ROWS, BIN_PAD), jnp.float32),
        unroll=(n_chunks <= 8))
    o_ref[...] += tile_stats


def ece_loss(logits, labels, n_bins=N_BINS, tile_b=None, num_cores=NUM_CORES):
    n, c = logits.shape
    itemsize = jnp.dtype(logits.dtype).itemsize
    cap = _vmem_capacity_bytes()
    if tile_b is None:
        tile_b = _choose_tile_b(n, c, itemsize, num_cores, cap)
    assert tile_b % 8 == 0
    chunk = _chunk_for(tile_b)
    assert tile_b % chunk == 0

    labels2d = labels.reshape(n, 1).astype(jnp.int32)

    total_tiles = pl.cdiv(n, tile_b)
    tiles_per_core = pl.cdiv(total_tiles, num_cores)
    last_block = total_tiles - 1

    def in_idx(core, i):
        # Clamp so duplicated tail blocks stay in-bounds; their rows are
        # rejected by the in-kernel global-row mask.
        return (jnp.minimum(core * tiles_per_core + i, last_block), 0)

    kernel = functools.partial(
        _ece_kernel, n_total=n, n_bins=n_bins,
        tile_b=tile_b, chunk=chunk, tiles_per_core=tiles_per_core)

    # VMEM limit: 2 double-buffered input blocks (logits + lane-padded labels)
    # + bounded chunk temporaries + headroom; clamped below physical capacity.
    row_bytes = _row_bytes(c, itemsize)
    temps = 12 * chunk * max(_round_up(c, 128), BIN_PAD) * 4
    vmem_limit = 2 * tile_b * row_bytes + temps + (8 << 20)
    vmem_limit = int(max(vmem_limit, 32 << 20))
    vmem_limit = int(min(vmem_limit, max(cap - (4 << 20), 16 << 20)))

    partials = pl.pallas_call(
        kernel,
        out_shape=jax.ShapeDtypeStruct((num_cores, ACC_ROWS, BIN_PAD),
                                       jnp.float32),
        grid_spec=pltpu.PrefetchScalarGridSpec(
            num_scalar_prefetch=0,
            grid=(num_cores, tiles_per_core),
            in_specs=[
                pl.BlockSpec((tile_b, c), in_idx),
                pl.BlockSpec((tile_b, 1), in_idx),
            ],
            out_specs=pl.BlockSpec((None, ACC_ROWS, BIN_PAD),
                                   lambda core, i: (core, 0, 0)),
        ),
        compiler_params=pltpu.CompilerParams(
            dimension_semantics=("parallel", "arbitrary"),
            vmem_limit_bytes=vmem_limit,
        ),
    )(logits, labels2d)

    # Tiny final reduction (3 x n_bins numbers) in plain JAX.
    stats = jnp.sum(partials, axis=0)                  # (ACC_ROWS, BIN_PAD)
    count = stats[0]
    sconf = stats[1] + stats[3]                        # hi + lo parts
    sacc = stats[2]
    prop = count / jnp.float32(n)
    safe = jnp.maximum(count, 1.0)
    gap = jnp.where(count > 0.0,
                    jnp.abs(sconf / safe - sacc / safe) * prop, 0.0)
    return jnp.sum(gap).reshape(1)                     # matches torch.zeros(1)


def ece_loss_ref(logits, labels, n_bins=N_BINS):
    """Pure-JAX reference mirroring the PyTorch forward."""
    softmaxes = jax.nn.softmax(logits.astype(jnp.float32), axis=1)
    confidences = jnp.max(softmaxes, axis=1)
    predictions = jnp.argmax(softmaxes, axis=1)
    accuracies = (predictions == labels).astype(jnp.float32)
    bounds = jnp.linspace(0.0, 1.0, n_bins + 1)
    ece = jnp.zeros((1,), jnp.float32)
    for b in range(n_bins):
        in_bin = (confidences > bounds[b]) & (confidences <= bounds[b + 1])
        prop = jnp.mean(in_bin.astype(jnp.float32))
        cnt = jnp.sum(in_bin.astype(jnp.float32))
        safe = jnp.maximum(cnt, 1.0)
        acc_in = jnp.sum(jnp.where(in_bin, accuracies, 0.0)) / safe
        conf_in = jnp.sum(jnp.where(in_bin, confidences, 0.0)) / safe
        gap = jnp.where(cnt > 0, jnp.abs(conf_in - acc_in) * prop, 0.0)
        ece = ece + gap
    return ece


if __name__ == "__main__":
    key = jax.random.PRNGKey(0)
    k1, k2 = jax.random.split(key)
    C = 32

    # Case 1: auto tile — whole per-core slice fits one tile, grid (2, 1).
    N = 256
    logits = jax.random.normal(k1, (N, C), dtype=jnp.float32) * 2.0
    labels = jax.random.randint(k2, (N,), 0, C, dtype=jnp.int32)
    ece = ece_loss(logits, labels)
    jax.block_until_ready(ece)
    ece_ref = ece_loss_ref(logits, labels)
    assert jnp.allclose(ece, ece_ref, atol=1e-5, rtol=1e-5), (ece, ece_ref)

    # Case 2: forced small tile -> multi-step inner axis plus a duplicated /
    # partial tail block handled entirely by the in-kernel row mask.
    N2 = 300
    logits2 = jax.random.normal(k1, (N2, C), dtype=jnp.float32) * 2.0
    labels2 = jax.random.randint(k2, (N2,), 0, C, dtype=jnp.int32)
    ece2 = ece_loss(logits2, labels2, tile_b=128)
    jax.block_until_ready(ece2)
    ece2_ref = ece_loss_ref(logits2, labels2)
    assert jnp.allclose(ece2, ece2_ref, atol=1e-5, rtol=1e-5), (ece2, ece2_ref)

    # Case 3: bf16 logits (half the HBM bytes; tile sizing is dtype-aware).
    logits3 = logits2.astype(jnp.bfloat16)
    ece3 = ece_loss(logits3, labels2)
    jax.block_until_ready(ece3)
    ece3_ref = ece_loss_ref(logits3, labels2)
    assert jnp.allclose(ece3, ece3_ref, atol=2e-5, rtol=2e-5), (ece3, ece3_ref)

    print("KERNEL_OK")
</pallas_src>

<mosaic_0001>
module attributes {stable_mosaic.version = 11 : i64} {
  func.func @_ece_kernel(%arg0: i32, %arg1: i32, %arg2: memref<128x32xf32, #tpu.memory_space<vmem>>, %arg3: memref<128x1xi32, #tpu.memory_space<vmem>>, %arg4: memref<1x8x128xf32, #tpu.memory_space<vmem>>) attributes {dimension_semantics = [#tpu.dimension_semantics<parallel>, #tpu.dimension_semantics<arbitrary>], iteration_bounds = array<i64: 2, 1>, scalar_prefetch = 0 : i64, scratch_operands = 0 : i64, tpu.core_type = #tpu.core_type<tc>, window_params = [{transform_indices = @transform_0, window_bounds = array<i64: 128, 32>}, {transform_indices = @transform_1, window_bounds = array<i64: 128, 1>}, {transform_indices = @transform_2, window_bounds = array<i64: 1, 8, 128>}]} {
    %c0_i32 = arith.constant 0 : i32
    %0 = arith.cmpi eq, %arg1, %c0_i32 : i32
    %1 = arith.extui %0 : i1 to i32
    %c0_i32_0 = arith.constant 0 : i32
    %2 = arith.cmpi ne, %1, %c0_i32_0 : i32
    scf.if %2 {
      %cst_26 = arith.constant 0.000000e+00 : f32
      %95 = vector.broadcast %cst_26 : f32 to vector<8x128xf32>
      %c0_27 = arith.constant 0 : index
      %c0_28 = arith.constant 0 : index
      %c0_29 = arith.constant 0 : index
      %96 = vector.load %arg4[%c0_27, %c0_28, %c0_29] : memref<1x8x128xf32, #tpu.memory_space<vmem>>, vector<1x8x128xf32>
      %97 = vector.shape_cast %96 : vector<1x8x128xf32> to vector<8x128xf32>
      %98 = vector.shape_cast %95 : vector<8x128xf32> to vector<1x8x128xf32>
      tpu.vector_store %arg4[%c0_27, %c0_28, %c0_29], %98 {strides = array<i32>} : memref<1x8x128xf32, #tpu.memory_space<vmem>>, vector<1x8x128xf32>,
    } else {
    }
    %3 = tpu.iota {dimensions = array<i32: 1>} : vector<1x128xi32>
    %4 = arith.sitofp %3 : vector<1x128xi32> to vector<1x128xf32>
    %c15_i32 = arith.constant 15 : i32
    %5 = vector.broadcast %c15_i32 : i32 to vector<1x128xi32>
    %6 = arith.cmpi slt, %3, %5 : vector<1x128xi32>
    %cst = arith.constant 1.500000e+01 : f32
    %7 = vector.broadcast %cst : f32 to vector<1x128xf32>
    %8 = arith.divf %4, %7 : vector<1x128xf32>
    %cst_1 = arith.constant 2.000000e+00 : f32
    %9 = vector.broadcast %cst_1 : f32 to vector<1x128xf32>
    %10 = arith.select %6, %8, %9 : vector<1x128xi1>, vector<1x128xf32>
    %cst_2 = arith.constant 1.000000e+00 : f32
    %11 = vector.broadcast %cst_2 : f32 to vector<1x128xf32>
    %12 = arith.addf %4, %11 : vector<1x128xf32>
    %cst_3 = arith.constant 1.500000e+01 : f32
    %13 = vector.broadcast %cst_3 : f32 to vector<1x128xf32>
    %14 = arith.divf %12, %13 : vector<1x128xf32>
    %cst_4 = arith.constant 2.000000e+00 : f32
    %15 = vector.broadcast %cst_4 : f32 to vector<1x128xf32>
    %16 = arith.select %6, %14, %15 : vector<1x128xi1>, vector<1x128xf32>
    %c1_i32 = arith.constant 1 : i32
    %17 = arith.muli %arg0, %c1_i32 : i32
    %18 = arith.addi %17, %arg1 : i32
    %c128_i32 = arith.constant 128 : i32
    %19 = arith.muli %18, %c128_i32 : i32
    %20 = tpu.iota {dimensions = array<i32: 1>} : vector<128x8xi32>
    %cst_5 = arith.constant 0.000000e+00 : f32
    %21 = vector.broadcast %cst_5 : f32 to vector<8x128xf32>
    %c0_i32_6 = arith.constant 0 : i32
    %c128_i32_7 = arith.constant 128 : i32
    %22 = arith.muli %c0_i32_6, %c128_i32_7 : i32
    %23 = tpu.assume_multiple %22, 128 : i32
    %24 = arith.index_cast %23 : i32 to index
    %c0 = arith.constant 0 : index
    %25 = vector.load %arg2[%24, %c0] : memref<128x32xf32, #tpu.memory_space<vmem>>, vector<128x32xf32>
    %26 = arith.index_cast %23 : i32 to index
    %c0_8 = arith.constant 0 : index
    %27 = vector.load %arg3[%26, %c0_8] : memref<128x1xi32, #tpu.memory_space<vmem>>, vector<128x1xi32>
    %cst_9 = arith.constant dense<0xFF800000> : vector<128xf32>
    %28 = vector.multi_reduction <maximumf>, %25, %cst_9 [1] : vector<128x32xf32> to vector<128xf32>
    %29 = vector.shape_cast %28 : vector<128xf32> to vector<128x1xf32>
    %30 = vector.broadcast %29 : vector<128x1xf32> to vector<128x32xf32>
    %31 = arith.subf %25, %30 : vector<128x32xf32>
    %32 = math.exp %31 : vector<128x32xf32>
    %cst_10 = arith.constant dense<0.000000e+00> : vector<128xf32>
    %33 = vector.multi_reduction <add>, %32, %cst_10 [1] : vector<128x32xf32> to vector<128xf32>
    %34 = vector.shape_cast %33 : vector<128xf32> to vector<128x1xf32>
    %cst_11 = arith.constant 1.000000e+00 : f32
    %35 = vector.broadcast %cst_11 : f32 to vector<128x1xf32>
    %36 = arith.divf %35, %34 : vector<128x1xf32>
    %37 = tpu.iota {dimensions = array<i32: 1>} : vector<128x32xi32>
    %38 = vector.broadcast %29 : vector<128x1xf32> to vector<128x32xf32>
    %39 = arith.cmpf oeq, %25, %38 : vector<128x32xf32>
    %c32_i32 = arith.constant 32 : i32
    %40 = vector.broadcast %c32_i32 : i32 to vector<128x32xi32>
    %41 = arith.select %39, %37, %40 : vector<128x32xi1>, vector<128x32xi32>
    %cst_12 = arith.constant dense<2147483647> : vector<128xi32>
    %42 = vector.multi_reduction <minsi>, %41, %cst_12 [1] : vector<128x32xi32> to vector<128xi32>
    %43 = vector.shape_cast %42 : vector<128xi32> to vector<128x1xi32>
    %44 = arith.cmpi eq, %43, %27 : vector<128x1xi32>
    %45 = arith.extui %44 : vector<128x1xi1> to vector<128x1xi32>
    %46 = arith.sitofp %45 : vector<128x1xi32> to vector<128x1xf32>
    %47 = tpu.iota {dimensions = array<i32: 0>} : vector<128x1xi32>
    %48 = arith.addi %19, %23 : i32
    %49 = vector.broadcast %48 : i32 to vector<128x1xi32>
    %50 = arith.addi %49, %47 : vector<128x1xi32>
    %c256_i32 = arith.constant 256 : i32
    %51 = vector.broadcast %c256_i32 : i32 to vector<128x1xi32>
    %52 = arith.cmpi slt, %50, %51 : vector<128x1xi32>
    %cst_13 = arith.constant -1.000000e+00 : f32
    %53 = vector.broadcast %cst_13 : f32 to vector<128x1xf32>
    %54 = arith.select %52, %36, %53 : vector<128x1xi1>, vector<128x1xf32>
    %55 = vector.broadcast %54 : vector<128x1xf32> to vector<128x128xf32>
    %56 = vector.broadcast %10 : vector<1x128xf32> to vector<128x128xf32>
    %57 = arith.cmpf ogt, %55, %56 : vector<128x128xf32>
    %58 = vector.broadcast %54 : vector<128x1xf32> to vector<128x128xf32>
    %59 = vector.broadcast %16 : vector<1x128xf32> to vector<128x128xf32>
    %60 = arith.cmpf ole, %58, %59 : vector<128x128xf32>
    %61 = arith.andi %57, %60 : vector<128x128xi1>
    %62 = arith.extui %61 : vector<128x128xi1> to vector<128x128xi32>
    %63 = arith.sitofp %62 : vector<128x128xi32> to vector<128x128xf32>
    %64 = arith.truncf %54 : vector<128x1xf32> to vector<128x1xbf16>
    %65 = arith.extf %64 : vector<128x1xbf16> to vector<128x1xf32>
    %66 = arith.subf %54, %65 : vector<128x1xf32>
    %c0_i32_14 = arith.constant 0 : i32
    %67 = vector.broadcast %c0_i32_14 : i32 to vector<128x8xi32>
    %68 = arith.cmpi eq, %20, %67 : vector<128x8xi32>
    %c1_i32_15 = arith.constant 1 : i32
    %69 = vector.broadcast %c1_i32_15 : i32 to vector<128x8xi32>
    %70 = arith.cmpi eq, %20, %69 : vector<128x8xi32>
    %c2_i32 = arith.constant 2 : i32
    %71 = vector.broadcast %c2_i32 : i32 to vector<128x8xi32>
    %72 = arith.cmpi eq, %20, %71 : vector<128x8xi32>
    %c3_i32 = arith.constant 3 : i32
    %73 = vector.broadcast %c3_i32 : i32 to vector<128x8xi32>
    %74 = arith.cmpi eq, %20, %73 : vector<128x8xi32>
    %cst_16 = arith.constant 0.000000e+00 : f32
    %75 = vector.shape_cast %66 : vector<128x1xf32> to vector<128x1xf32>
    %76 = vector.broadcast %75 : vector<128x1xf32> to vector<128x8xf32>
    %77 = vector.broadcast %cst_16 : f32 to vector<128x8xf32>
    %78 = arith.select %74, %76, %77 : vector<128x8xi1>, vector<128x8xf32>
    %79 = vector.shape_cast %46 : vector<128x1xf32> to vector<128x1xf32>
    %80 = vector.broadcast %79 : vector<128x1xf32> to vector<128x8xf32>
    %81 = arith.select %72, %80, %78 : vector<128x8xi1>, vector<128x8xf32>
    %82 = vector.shape_cast %65 : vector<128x1xf32> to vector<128x1xf32>
    %83 = vector.broadcast %82 : vector<128x1xf32> to vector<128x8xf32>
    %84 = arith.select %70, %83, %81 : vector<128x8xi1>, vector<128x8xf32>
    %cst_17 = arith.constant 1.000000e+00 : f32
    %85 = vector.broadcast %cst_17 : f32 to vector<128x8xf32>
    %86 = arith.select %68, %85, %84 : vector<128x8xi1>, vector<128x8xf32>
    %cst_18 = arith.constant dense<0.000000e+00> : vector<8x128xf32>
    %87 = tpu.matmul %86, %63, %cst_18 {dimension_numbers = #tpu.dot_dimension_numbers<[0], [0], [1], [1], [0, 1, 1, 1], [], []>} : vector<128x8xf32>, vector<128x128xf32>, vector<8x128xf32> -> vector<8x128xf32>
    %88 = arith.addf %21, %87 : vector<8x128xf32>
    %c1_i32_19 = arith.constant 1 : i32
    %c0_20 = arith.constant 0 : index
    %c0_21 = arith.constant 0 : index
    %c0_22 = arith.constant 0 : index
    %89 = vector.load %arg4[%c0_20, %c0_21, %c0_22] : memref<1x8x128xf32, #tpu.memory_space<vmem>>, vector<1x8x128xf32>
    %90 = vector.shape_cast %89 : vector<1x8x128xf32> to vector<8x128xf32>
    %91 = arith.addf %90, %88 : vector<8x128xf32>
    %c0_23 = arith.constant 0 : index
    %c0_24 = arith.constant 0 : index
    %c0_25 = arith.constant 0 : index
    %92 = vector.load %arg4[%c0_23, %c0_24, %c0_25] : memref<1x8x128xf32, #tpu.memory_space<vmem>>, vector<1x8x128xf32>
    %93 = vector.shape_cast %92 : vector<1x8x128xf32> to vector<8x128xf32>
    %94 = vector.shape_cast %91 : vector<8x128xf32> to vector<1x8x128xf32>
    tpu.vector_store %arg4[%c0_23, %c0_24, %c0_25], %94 {strides = array<i32>} : memref<1x8x128xf32, #tpu.memory_space<vmem>>, vector<1x8x128xf32>,
    return
  }
  func.func @transform_0(%arg0: i32, %arg1: i32) -> (i32, i32) {
    %c1_i32 = arith.constant 1 : i32
    %0 = arith.muli %arg0, %c1_i32 : i32
    %1 = arith.addi %0, %arg1 : i32
    %c1_i32_0 = arith.constant 1 : i32
    %2 = arith.minsi %1, %c1_i32_0 : i32
    %c0_i32 = arith.constant 0 : i32
    %c0_i32_1 = arith.constant 0 : i32
    return %2, %c0_i32 : i32, i32
  }
  func.func @transform_1(%arg0: i32, %arg1: i32) -> (i32, i32) {
    %c1_i32 = arith.constant 1 : i32
    %0 = arith.muli %arg0, %c1_i32 : i32
    %1 = arith.addi %0, %arg1 : i32
    %c1_i32_0 = arith.constant 1 : i32
    %2 = arith.minsi %1, %c1_i32_0 : i32
    %c0_i32 = arith.constant 0 : i32
    %c0_i32_1 = arith.constant 0 : i32
    return %2, %c0_i32 : i32, i32
  }
  func.func @transform_2(%arg0: i32, %arg1: i32) -> (i32, i32, i32) {
    %c0_i32 = arith.constant 0 : i32
    %c0_i32_0 = arith.constant 0 : i32
    %c0_i32_1 = arith.constant 0 : i32
    return %arg0, %c0_i32, %c0_i32_0 : i32, i32, i32
  }
}

</mosaic_0001>

<llo_original>
// kernel: tpu_custom_call.1
$region0: #{tpu_custom_call.1}
  #allocation0 [shape = 'u32[]', space=smem, size = 0x4, offset = 0x4, fixed_abs, tag = 'smem constant byte address 0x4 - core index']
  #allocation1 [shape = 'u32[144,128]{1,0:T(1,128)}', space=vmem, size = 0x12000, scoped, tag = 'internal scratch']
  %s0 = inlined_call_operand.vmem [shape: f32[256,32], index: 0, kind: input, shape index: {}]
  %s1 = inlined_call_operand.vmem [shape: s32[256,1], index: 1, kind: input, shape index: {}]
  %s2 = inlined_call_operand.hbm [shape: f32[2,8,128], index: 2, kind: output, shape index: {}]
  %s3 = sld [smem:[#allocation0]]
  $region45: #{tpu_custom_call.1} parent=0
    _
  %s5 = ssub.s32 1, %s3
  %s6 = scalar_select 0, %s5, %s3
  $region1: #{tpu_custom_call.1} parent=0
    #allocation2 [shape = 'u8[8192]{0}', space=vmem, size = 0x2000, scoped, tag = 'output window, operand 0']
    #allocation3 [shape = 's32[2]{0}', space=sflag, size = 0x8, scoped, tag = 'scoped memory for tpu_custom_call.1']
    %7 = vsyncpa [#allocation3], 0
    %s8 = scalar_lea.sflag [#allocation3], 1
    %9 = vsyncpa %s8, 0
    loop: start=0, step=1, limit=4
    $region2: #{tpu_custom_call.1} parent=1 // loop_pre_header
      _
    $region3: #{tpu_custom_call.1} parent=1 // loop_header
      %s11 = sphi 0, %s15
      %p12 = scmp.ge.s32.totalorder %s11, 4
      %s18 = sphi 0, %s30
      %s19 = sphi 0, %s26
      %s20 = sphi 0, %s18
      %s21 = sphi 0, %s19
      %s22 = sphi 0, %s20
      %s23 = sphi 0, %s21
      %s39 = sphi 0, %s41
      %s42 = sphi 0, %s39
      %s43 = sphi 0, %s42
      %s59 = sphi 0, %s43
      %s71 = sphi 0, %s73
      %s74 = sphi 0, %s71
      %s75 = sphi 0, %s74
      %s91 = sphi 0, %s75
      %s97 = sphi 0, %s99
      %s100 = sphi 0, %s97
      %s101 = sphi 0, %s100
      %s117 = sphi 0, %s101
    $region4: #{tpu_custom_call.1} parent=1 // loop_header_branch
      %14 = sbr.rel (%p12) target = $region8
    $region5: #{tpu_custom_call.1} parent=1 // loop_body
      %s16 = ssub.s32 %s11, 1
      %s17 = ssub.s32 %s11, 2
      %s24 = sadd.s32 1, %s19
      %p25 = scmp.ge.s32.totalorder %s24, 1
      %s26 = scalar_select %p25, 0, %s24
      %s27 = sadd.s32 1, %s18
      %s28 = scalar_select %p25, %s27, %s18
      %p29 = scmp.ge.s32.totalorder %s28, 2
      %s30 = scalar_select %p29, 0, %s28
      %s31 = sadd.s32 %s18, %s19
      %p32 = scmp.lt.s32.totalorder %s31, 1
      %s33 = scalar_select %p32, %s31, 1
      %s34 = sadd.s32 %s30, %s26
      %p35 = scmp.lt.s32.totalorder %s34, 1
      %s36 = scalar_select %p35, %s34, 1
      %s37 = ssub.s32 %s33, %s36
      %p38 = scmp.eq.s32.totalorder %s37, 0
      %s40 = sadd.s32 %s39, 1
      %s41 = scalar_select %p38, %s39, %s40
      %p44 = pneg %p38
      %p45 = scmp.eq.s32.totalorder %s11, 1
      %p46 = por %p44, %p45
      %p47 = scmp.ne.s32.totalorder %s39, %s42
      %p48 = scmp.eq.s32.totalorder %s11, 0
      %p49 = por %p47, %p48
      %p50 = scmp.ne.s32.totalorder %s39, %s42
      %p51 = scmp.eq.s32.totalorder %s16, 1
      %p52 = por %p50, %p51
      %p53 = scmp.ne.s32.totalorder %s42, %s43
      %p54 = scmp.eq.s32.totalorder %s16, 0
      %p55 = por %p53, %p54
      %p56 = scmp.ne.s32.totalorder %s42, %s43
      %p57 = scmp.eq.s32.totalorder %s17, 1
      %p58 = por %p56, %p57
      %p60 = scmp.ne.s32.totalorder %s43, %s59
      %p61 = scmp.eq.s32.totalorder %s17, 0
      %p62 = por %p60, %p61
      %s63 = sadd.s32 %s18, %s19
      %p64 = scmp.lt.s32.totalorder %s63, 1
      %s65 = scalar_select %p64, %s63, 1
      %s66 = sadd.s32 %s30, %s26
      %p67 = scmp.lt.s32.totalorder %s66, 1
      %s68 = scalar_select %p67, %s66, 1
      %s69 = ssub.s32 %s65, %s68
      %p70 = scmp.eq.s32.totalorder %s69, 0
      %s72 = sadd.s32 %s71, 1
      %s73 = scalar_select %p70, %s71, %s72
      %p76 = pneg %p70
      %p77 = scmp.eq.s32.totalorder %s11, 1
      %p78 = por %p76, %p77
      %p79 = scmp.ne.s32.totalorder %s71, %s74
      %p80 = scmp.eq.s32.totalorder %s11, 0
      %p81 = por %p79, %p80
      %p82 = scmp.ne.s32.totalorder %s71, %s74
      %p83 = scmp.eq.s32.totalorder %s16, 1
      %p84 = por %p82, %p83
      %p85 = scmp.ne.s32.totalorder %s74, %s75
      %p86 = scmp.eq.s32.totalorder %s16, 0
      %p87 = por %p85, %p86
      %p88 = scmp.ne.s32.totalorder %s74, %s75
      %p89 = scmp.eq.s32.totalorder %s17, 1
      %p90 = por %p88, %p89
      %p92 = scmp.ne.s32.totalorder %s75, %s91
      %p93 = scmp.eq.s32.totalorder %s17, 0
      %p94 = por %p92, %p93
      %s95 = ssub.s32 %s18, %s30
      %p96 = scmp.eq.s32.totalorder %s95, 0
      %s98 = sadd.s32 %s97, 1
      %s99 = scalar_select %p96, %s97, %s98
      %p102 = pneg %p96
      %p103 = scmp.eq.s32.totalorder %s11, 1
      %p104 = por %p102, %p103
      %p105 = scmp.ne.s32.totalorder %s97, %s100
      %p106 = scmp.eq.s32.totalorder %s11, 0
      %p107 = por %p105, %p106
      %p108 = scmp.ne.s32.totalorder %s97, %s100
      %p109 = scmp.eq.s32.totalorder %s16, 1
      %p110 = por %p108, %p109
      %p111 = scmp.ne.s32.totalorder %s100, %s101
      %p112 = scmp.eq.s32.totalorder %s16, 0
      %p113 = por %p111, %p112
      %p114 = scmp.ne.s32.totalorder %s100, %s101
      %p115 = scmp.eq.s32.totalorder %s17, 1
      %p116 = por %p114, %p115
      %p118 = scmp.ne.s32.totalorder %s101, %s117
      %p119 = scmp.eq.s32.totalorder %s17, 0
      %p120 = por %p118, %p119
      %p121 = scmp.le.s32.totalorder 1, %s11
      %p122 = scmp.lt.s32.totalorder %s11, 3
      %p123 = pnand %p121, %p122
      %p124 = pneg %p123
      // Predicated region
      $region9: #{tpu_custom_call.1} parent=5 // pred_check
        _
      $region10: #{tpu_custom_call.1} parent=5 // pred_check_branch
        %126 = sbr.rel (%p123) target = $region12
      $region11: #{tpu_custom_call.1} parent=5 // pred_region
        %s127 = ssub.s32 %s11, 1
      $region12: #{tpu_custom_call.1} parent=5 // pred_fallthru
        _
      %p128 = scmp.lt.s32.totalorder %s11, 2
      // Predicated region
      $region13: #{tpu_custom_call.1} parent=5 // pred_check
        %p129 = pneg %p128
      $region14: #{tpu_custom_call.1} parent=5 // pred_check_branch
        %131 = sbr.rel (%p129) target = $region16
      $region15: #{tpu_custom_call.1} parent=5 // pred_region
        // Predicated region
        $region17: #{tpu_custom_call.1} parent=15 // pred_check
          %p132 = pneg %p49
        $region18: #{tpu_custom_call.1} parent=15 // pred_check_branch
          %134 = sbr.rel (%p132) target = $region20
        $region19: #{tpu_custom_call.1} parent=15 // pred_region
          %s135 = sadd.s32 %s18, %s19
          %p136 = scmp.lt.s32.totalorder %s135, 1
          %s137 = scalar_select %p136, %s135, 1
          %s138 = smul.u32 16, %s137
          %p139 = scmp.lt.s32.totalorder %s138, 31
          %s140 = scalar_select %p139, %s138, 31
          %s141 = smul.addr %s140, 8
          %s142 = scalar_lea.vmem %s0, %s141
          %s143 = sadd.s32 %s18, %s19
          %p144 = scmp.lt.s32.totalorder %s143, 1
          %s145 = scalar_select %p144, %s143, 1
          %s146 = smul.u32 16, %s145
        $region20: #{tpu_custom_call.1} parent=15 // pred_fallthru
          _
        // Predicated region
        $region21: #{tpu_custom_call.1} parent=15 // pred_check
          %p147 = pneg %p81
        $region22: #{tpu_custom_call.1} parent=15 // pred_check_branch
          %149 = sbr.rel (%p147) target = $region24
        $region23: #{tpu_custom_call.1} parent=15 // pred_region
          %s150 = sadd.s32 %s18, %s19
          %p151 = scmp.lt.s32.totalorder %s150, 1
          %s152 = scalar_select %p151, %s150, 1
          %s153 = smul.u32 16, %s152
          %p154 = scmp.lt.s32.totalorder %s153, 31
          %s155 = scalar_select %p154, %s153, 31
          %s156 = smul.addr %s155, 8
          %s157 = scalar_lea.vmem %s1, %s156
          %s158 = sadd.s32 %s18, %s19
          %p159 = scmp.lt.s32.totalorder %s158, 1
          %s160 = scalar_select %p159, %s158, 1
          %s161 = smul.u32 16, %s160
        $region24: #{tpu_custom_call.1} parent=15 // pred_fallthru
          _
      $region16: #{tpu_custom_call.1} parent=5 // pred_fallthru
        _
      %p162 = scmp.le.s32.totalorder 1, %s11
      %p163 = scmp.lt.s32.totalorder %s11, 3
      %p164 = pnand %p162, %p163
      %p165 = pneg %p164
      // Predicated region
      $region25: #{tpu_custom_call.1} parent=5 // pred_check
        _
      $region26: #{tpu_custom_call.1} parent=5 // pred_check_branch
        %167 = sbr.rel (%p164) target = $region28
      $region27: #{tpu_custom_call.1} parent=5 // pred_region
        %s168 = ssub.s32 %s11, 1
        %s169 = sadd.s32 %s20, %s21
        %p170 = scmp.lt.s32.totalorder %s169, 1
        %s171 = scalar_select %p170, %s169, 1
        %s172 = smul.u32 16, %s171
        %p173 = scmp.lt.s32.totalorder %s172, 31
        %s174 = scalar_select %p173, %s172, 31
        %s175 = smul.addr %s174, 8
        %s176 = scalar_lea.vmem %s0, %s175
        %p177 = pneg %p55
        %p178 = pneg %p52
        %s179 = sadd.s32 %s20, %s21
        %p180 = scmp.lt.s32.totalorder %s179, 1
        %s181 = scalar_select %p180, %s179, 1
        %s182 = smul.u32 16, %s181
        %p183 = scmp.lt.s32.totalorder %s182, 31
        %s184 = scalar_select %p183, %s182, 31
        %s185 = smul.addr %s184, 8
        %s186 = scalar_lea.vmem %s1, %s185
        %p187 = pneg %p87
        %p188 = pneg %p84
        %p189 = pneg %p113
        %p190 = pneg %p110
        %s191 = sand.u32 %s100, 1
        %s192 = scalar_lea.sflag [#allocation3], %s191
        %s193 = sand.u32 %s100, 1
        %s194 = smul.addr %s193, 8
        %s195 = scalar_lea.vmem [#allocation2], %s194
        %s196 = sadd.s32 %s20, %s21
        %p197 = scmp.lt.s32.totalorder %s196, 1
        %s198 = scalar_select %p197, %s196, 1
        %s199 = smul.u32 16, %s198
        %p200 = scmp.lt.s32.totalorder %s199, 31
        %s201 = scalar_select %p200, %s199, 31
        %s202 = smul.addr %s201, 8
        %s203 = scalar_lea.vmem %s0, %s202
        %s204 = sadd.s32 %s20, %s21
        %p205 = scmp.lt.s32.totalorder %s204, 1
        %s206 = scalar_select %p205, %s204, 1
        %s207 = smul.u32 16, %s206
        %s208 = sadd.s32 %s20, %s21
        %p209 = scmp.lt.s32.totalorder %s208, 1
        %s210 = scalar_select %p209, %s208, 1
        %s211 = smul.u32 16, %s210
        %p212 = scmp.lt.s32.totalorder %s211, 31
        %s213 = scalar_select %p212, %s211, 31
        %s214 = smul.addr %s213, 8
        %s215 = scalar_lea.vmem %s1, %s214
        %s216 = sadd.s32 %s20, %s21
        %p217 = scmp.lt.s32.totalorder %s216, 1
        %s218 = scalar_select %p217, %s216, 1
        %s219 = smul.u32 16, %s218
        %p220 = scmp.eq.s32.totalorder %s21, 0
        // Predicated region
        $region29: #{tpu_custom_call.1} parent=27 // pred_check
          %p221 = pneg %p220
        $region30: #{tpu_custom_call.1} parent=27 // pred_check_branch
          %223 = sbr.rel (%p221) target = $region32
        $region31: #{tpu_custom_call.1} parent=27 // pred_region
          %224 = vst [vmem:[%s195] sm:$0xff] 0.0
        $region32: #{tpu_custom_call.1} parent=27 // pred_fallthru
          _
        %v225 = vlaneseq
        %v226 = vand.u32 %v225, 127
        %v227 = vcvt.s32.f32 %v226
        %vm228 = vcmp.lt.s32.totalorder %v226, 15
        %v229 = vrcp.pop 15.0
        %v230 = vmul.f32 %v227, %v229
        %v231 = vsel %vm228, %v230, 2.0
        %v232 = vadd.f32 %v227, 1.0
        %v233 = vmul.f32 %v232, %v229
        %v234 = vsel %vm228, %v233, 2.0
        %s235 = sadd.s32 %s20, %s21
        %s236 = smul.u32 %s235, 128
        %v237 = vld [vmem:[%s203] sm:$0xff]
        %v238 = vld [vmem:[%s203 + $0x8] sm:$0xff]
        %v239 = vld [vmem:[%s203 + $0x10] sm:$0xff]
        %v240 = vld [vmem:[%s203 + $0x18] sm:$0xff]
        %v241 = vld [vmem:[%s203 + $0x20] sm:$0xff]
        %v242 = vld [vmem:[%s203 + $0x28] sm:$0xff]
        %v243 = vld [vmem:[%s203 + $0x30] sm:$0xff]
        %v244 = vld [vmem:[%s203 + $0x38] sm:$0xff]
        %v245 = vld [vmem:[%s203 + $0x40] sm:$0xff]
        %v246 = vld [vmem:[%s203 + $0x48] sm:$0xff]
        %v247 = vld [vmem:[%s203 + $0x50] sm:$0xff]
        %v248 = vld [vmem:[%s203 + $0x58] sm:$0xff]
        %v249 = vld [vmem:[%s203 + $0x60] sm:$0xff]
        %v250 = vld [vmem:[%s203 + $0x68] sm:$0xff]
        %v251 = vld [vmem:[%s203 + $0x70] sm:$0xff]
        %v252 = vld [vmem:[%s203 + $0x78] sm:$0xff]
        %v253 = vld [vmem:[%s215] sm:$0xff]
        %v254 = vld [vmem:[%s215 + $0x8] sm:$0xff]
        %v255 = vld [vmem:[%s215 + $0x10] sm:$0xff]
        %v256 = vld [vmem:[%s215 + $0x18] sm:$0xff]
        %v257 = vld [vmem:[%s215 + $0x20] sm:$0xff]
        %v258 = vld [vmem:[%s215 + $0x28] sm:$0xff]
        %v259 = vld [vmem:[%s215 + $0x30] sm:$0xff]
        %v260 = vld [vmem:[%s215 + $0x38] sm:$0xff]
        %v261 = vld [vmem:[%s215 + $0x40] sm:$0xff]
        %v262 = vld [vmem:[%s215 + $0x48] sm:$0xff]
        %v263 = vld [vmem:[%s215 + $0x50] sm:$0xff]
        %v264 = vld [vmem:[%s215 + $0x58] sm:$0xff]
        %v265 = vld [vmem:[%s215 + $0x60] sm:$0xff]
        %v266 = vld [vmem:[%s215 + $0x68] sm:$0xff]
        %v267 = vld [vmem:[%s215 + $0x70] sm:$0xff]
        %v268 = vld [vmem:[%s215 + $0x78] sm:$0xff]
        %vm269 = vcmask 261120
        %v270 = vsel %vm269, %v237, -inf
        %271 = vmax.xlane.f32.xlu0 %v270
        %v272 = vpop.xlane.xlu0 %271
        %v273 = vsel %vm269, %v238, -inf
        %274 = vmax.xlane.f32.xlu0 %v273
        %v275 = vpop.xlane.xlu0 %274
        %v276 = vsel %vm269, %v239, -inf
        %277 = vmax.xlane.f32.xlu0 %v276
        %v278 = vpop.xlane.xlu0 %277
        %v279 = vsel %vm269, %v240, -inf
        %280 = vmax.xlane.f32.xlu0 %v279
        %v281 = vpop.xlane.xlu0 %280
        %v282 = vsel %vm269, %v241, -inf
        %283 = vmax.xlane.f32.xlu0 %v282
        %v284 = vpop.xlane.xlu0 %283
        %v285 = vsel %vm269, %v242, -inf
        %286 = vmax.xlane.f32.xlu0 %v285
        %v287 = vpop.xlane.xlu0 %286
        %v288 = vsel %vm269, %v243, -inf
        %289 = vmax.xlane.f32.xlu0 %v288
        %v290 = vpop.xlane.xlu0 %289
        %v291 = vsel %vm269, %v244, -inf
        %292 = vmax.xlane.f32.xlu0 %v291
        %v293 = vpop.xlane.xlu0 %292
        %v294 = vsel %vm269, %v245, -inf
        %295 = vmax.xlane.f32.xlu0 %v294
        %v296 = vpop.xlane.xlu0 %295
        %v297 = vsel %vm269, %v246, -inf
        %298 = vmax.xlane.f32.xlu0 %v297
        %v299 = vpop.xlane.xlu0 %298
        %v300 = vsel %vm269, %v247, -inf
        %301 = vmax.xlane.f32.xlu0 %v300
        %v302 = vpop.xlane.xlu0 %301
        %v303 = vsel %vm269, %v248, -inf
        %304 = vmax.xlane.f32.xlu0 %v303
        %v305 = vpop.xlane.xlu0 %304
        %v306 = vsel %vm269, %v249, -inf
        %307 = vmax.xlane.f32.xlu0 %v306
        %v308 = vpop.xlane.xlu0 %307
        %v309 = vsel %vm269, %v250, -inf
        %310 = vmax.xlane.f32.xlu0 %v309
        %v311 = vpop.xlane.xlu0 %310
        %v312 = vsel %vm269, %v251, -inf
        %313 = vmax.xlane.f32.xlu0 %v312
        %v314 = vpop.xlane.xlu0 %313
        %v315 = vsel %vm269, %v252, -inf
        %316 = vmax.xlane.f32.xlu0 %v315
        %v317 = vpop.xlane.xlu0 %316
        %v318 = vsub.f32 %v237, %v272
        %v319 = vsub.f32 %v238, %v275
        %v320 = vsub.f32 %v239, %v278
        %v321 = vsub.f32 %v240, %v281
        %v322 = vsub.f32 %v241, %v284
        %v323 = vsub.f32 %v242, %v287
        %v324 = vsub.f32 %v243, %v290
        %v325 = vsub.f32 %v244, %v293
        %v326 = vsub.f32 %v245, %v296
        %v327 = vsub.f32 %v246, %v299
        %v328 = vsub.f32 %v247, %v302
        %v329 = vsub.f32 %v248, %v305
        %v330 = vsub.f32 %v249, %v308
        %v331 = vsub.f32 %v250, %v311
        %v332 = vsub.f32 %v251, %v314
        %v333 = vsub.f32 %v252, %v317
        %v334 = vmul.f32 %v318, 1.442695
        %v335 = vpow.pop %v334
        %v336 = vmul.f32 %v319, 1.442695
        %v337 = vpow.pop %v336
        %v338 = vmul.f32 %v320, 1.442695
        %v339 = vpow.pop %v338
        %v340 = vmul.f32 %v321, 1.442695
        %v341 = vpow.pop %v340
        %v342 = vmul.f32 %v322, 1.442695
        %v343 = vpow.pop %v342
        %v344 = vmul.f32 %v323, 1.442695
        %v345 = vpow.pop %v344
        %v346 = vmul.f32 %v324, 1.442695
        %v347 = vpow.pop %v346
        %v348 = vmul.f32 %v325, 1.442695
        %v349 = vpow.pop %v348
        %v350 = vmul.f32 %v326, 1.442695
        %v351 = vpow.pop %v350
        %v352 = vmul.f32 %v327, 1.442695
        %v353 = vpow.pop %v352
        %v354 = vmul.f32 %v328, 1.442695
        %v355 = vpow.pop %v354
        %v356 = vmul.f32 %v329, 1.442695
        %v357 = vpow.pop %v356
        %v358 = vmul.f32 %v330, 1.442695
        %v359 = vpow.pop %v358
        %v360 = vmul.f32 %v331, 1.442695
        %v361 = vpow.pop %v360
        %v362 = vmul.f32 %v332, 1.442695
        %v363 = vpow.pop %v362
        %v364 = vmul.f32 %v333, 1.442695
        %v365 = vpow.pop %v364
        %v366 = vsel %vm269, %v335, 0.0
        %367 = vadd.xlane.f32.xlu0 %v366
        %v368 = vpop.xlane.xlu0 %367
        %v369 = vsel %vm269, %v337, 0.0
        %370 = vadd.xlane.f32.xlu0 %v369
        %v371 = vpop.xlane.xlu0 %370
        %v372 = vsel %vm269, %v339, 0.0
        %373 = vadd.xlane.f32.xlu0 %v372
        %v374 = vpop.xlane.xlu0 %373
        %v375 = vsel %vm269, %v341, 0.0
        %376 = vadd.xlane.f32.xlu0 %v375
        %v377 = vpop.xlane.xlu0 %376
        %v378 = vsel %vm269, %v343, 0.0
        %379 = vadd.xlane.f32.xlu0 %v378
        %v380 = vpop.xlane.xlu0 %379
        %v381 = vsel %vm269, %v345, 0.0
        %382 = vadd.xlane.f32.xlu0 %v381
        %v383 = vpop.xlane.xlu0 %382
        %v384 = vsel %vm269, %v347, 0.0
        %385 = vadd.xlane.f32.xlu0 %v384
        %v386 = vpop.xlane.xlu0 %385
        %v387 = vsel %vm269, %v349, 0.0
        %388 = vadd.xlane.f32.xlu0 %v387
        %v389 = vpop.xlane.xlu0 %388
        %v390 = vsel %vm269, %v351, 0.0
        %391 = vadd.xlane.f32.xlu0 %v390
        %v392 = vpop.xlane.xlu0 %391
        %v393 = vsel %vm269, %v353, 0.0
        %394 = vadd.xlane.f32.xlu0 %v393
        %v395 = vpop.xlane.xlu0 %394
        %v396 = vsel %vm269, %v355, 0.0
        %397 = vadd.xlane.f32.xlu0 %v396
        %v398 = vpop.xlane.xlu0 %397
        %v399 = vsel %vm269, %v357, 0.0
        %400 = vadd.xlane.f32.xlu0 %v399
        %v401 = vpop.xlane.xlu0 %400
        %v402 = vsel %vm269, %v359, 0.0
        %403 = vadd.xlane.f32.xlu0 %v402
        %v404 = vpop.xlane.xlu0 %403
        %v405 = vsel %vm269, %v361, 0.0
        %406 = vadd.xlane.f32.xlu0 %v405
        %v407 = vpop.xlane.xlu0 %406
        %v408 = vsel %vm269, %v363, 0.0
        %409 = vadd.xlane.f32.xlu0 %v408
        %v410 = vpop.xlane.xlu0 %409
        %v411 = vsel %vm269, %v365, 0.0
        %412 = vadd.xlane.f32.xlu0 %v411
        %v413 = vpop.xlane.xlu0 %412
        %v414 = vrcp.pop %v368
        %v415 = vmul.f32 1.0, %v414
        %v416 = vrcp.pop %v371
        %v417 = vmul.f32 1.0, %v416
        %v418 = vrcp.pop %v374
        %v419 = vmul.f32 1.0, %v418
        %v420 = vrcp.pop %v377
        %v421 = vmul.f32 1.0, %v420
        %v422 = vrcp.pop %v380
        %v423 = vmul.f32 1.0, %v422
        %v424 = vrcp.pop %v383
        %v425 = vmul.f32 1.0, %v424
        %v426 = vrcp.pop %v386
        %v427 = vmul.f32 1.0, %v426
        %v428 = vrcp.pop %v389
        %v429 = vmul.f32 1.0, %v428
        %v430 = vrcp.pop %v392
        %v431 = vmul.f32 1.0, %v430
        %v432 = vrcp.pop %v395
        %v433 = vmul.f32 1.0, %v432
        %v434 = vrcp.pop %v398
        %v435 = vmul.f32 1.0, %v434
        %v436 = vrcp.pop %v401
        %v437 = vmul.f32 1.0, %v436
        %v438 = vrcp.pop %v404
        %v439 = vmul.f32 1.0, %v438
        %v440 = vrcp.pop %v407
        %v441 = vmul.f32 1.0, %v440
        %v442 = vrcp.pop %v410
        %v443 = vmul.f32 1.0, %v442
        %v444 = vrcp.pop %v413
        %v445 = vmul.f32 1.0, %v444
        %vm446 = vcmp.eq.f32.partialorder %v237, %v272
        %vm447 = vcmp.eq.f32.partialorder %v238, %v275
        %vm448 = vcmp.eq.f32.partialorder %v239, %v278
        %vm449 = vcmp.eq.f32.partialorder %v240, %v281
        %vm450 = vcmp.eq.f32.partialorder %v241, %v284
        %vm451 = vcmp.eq.f32.partialorder %v242, %v287
        %vm452 = vcmp.eq.f32.partialorder %v243, %v290
        %vm453 = vcmp.eq.f32.partialorder %v244, %v293
        %vm454 = vcmp.eq.f32.partialorder %v245, %v296
        %vm455 = vcmp.eq.f32.partialorder %v246, %v299
        %vm456 = vcmp.eq.f32.partialorder %v247, %v302
        %vm457 = vcmp.eq.f32.partialorder %v248, %v305
        %vm458 = vcmp.eq.f32.partialorder %v249, %v308
        %vm459 = vcmp.eq.f32.partialorder %v250, %v311
        %vm460 = vcmp.eq.f32.partialorder %v251, %v314
        %vm461 = vcmp.eq.f32.partialorder %v252, %v317
        %v462 = vsel %vm446, %v226, 32
        %v463 = vsel %vm447, %v226, 32
        %v464 = vsel %vm448, %v226, 32
        %v465 = vsel %vm449, %v226, 32
        %v466 = vsel %vm450, %v226, 32
        %v467 = vsel %vm451, %v226, 32
        %v468 = vsel %vm452, %v226, 32
        %v469 = vsel %vm453, %v226, 32
        %v470 = vsel %vm454, %v226, 32
        %v471 = vsel %vm455, %v226, 32
        %v472 = vsel %vm456, %v226, 32
        %v473 = vsel %vm457, %v226, 32
        %v474 = vsel %vm458, %v226, 32
        %v475 = vsel %vm459, %v226, 32
        %v476 = vsel %vm460, %v226, 32
        %v477 = vsel %vm461, %v226, 32
        %v478 = vsel %vm269, %v462, 2147483647
        %v479 = vand.u32 %v478, 65535
        %v480 = vshra.s32 %v478, 16
        %v481 = vcvt.s32.f32 %v479
        %v482 = vcvt.s32.f32 %v480
        %483 = vmin.xlane.f32.xlu0 %v482
        %v484 = vpop.xlane.xlu0 %483
        %vm485 = vcmp.eq.f32.partialorder %v482, %v484
        %v486 = vsel %vm485, %v481, inf
        %487 = vmin.xlane.f32.xlu0 %v486
        %v488 = vpop.xlane.xlu0 %487
        %v489 = vcvt.f32.s32 %v488
        %v490 = vcvt.f32.s32 %v484
        %v491 = vshll.u32 %v490, 16
        %v492 = vadd.s32 %v491, %v489
        %v493 = vsel %vm269, %v463, 2147483647
        %v494 = vand.u32 %v493, 65535
        %v495 = vshra.s32 %v493, 16
        %v496 = vcvt.s32.f32 %v494
        %v497 = vcvt.s32.f32 %v495
        %498 = vmin.xlane.f32.xlu0 %v497
        %v499 = vpop.xlane.xlu0 %498
        %vm500 = vcmp.eq.f32.partialorder %v497, %v499
        %v501 = vsel %vm500, %v496, inf
        %502 = vmin.xlane.f32.xlu0 %v501
        %v503 = vpop.xlane.xlu0 %502
        %v504 = vcvt.f32.s32 %v503
        %v505 = vcvt.f32.s32 %v499
        %v506 = vshll.u32 %v505, 16
        %v507 = vadd.s32 %v506, %v504
        %v508 = vsel %vm269, %v464, 2147483647
        %v509 = vand.u32 %v508, 65535
        %v510 = vshra.s32 %v508, 16
        %v511 = vcvt.s32.f32 %v509
        %v512 = vcvt.s32.f32 %v510
        %513 = vmin.xlane.f32.xlu0 %v512
        %v514 = vpop.xlane.xlu0 %513
        %vm515 = vcmp.eq.f32.partialorder %v512, %v514
        %v516 = vsel %vm515, %v511, inf
        %517 = vmin.xlane.f32.xlu0 %v516
        %v518 = vpop.xlane.xlu0 %517
        %v519 = vcvt.f32.s32 %v518
        %v520 = vcvt.f32.s32 %v514
        %v521 = vshll.u32 %v520, 16
        %v522 = vadd.s32 %v521, %v519
        %v523 = vsel %vm269, %v465, 2147483647
        %v524 = vand.u32 %v523, 65535
        %v525 = vshra.s32 %v523, 16
        %v526 = vcvt.s32.f32 %v524
        %v527 = vcvt.s32.f32 %v525
        %528 = vmin.xlane.f32.xlu0 %v527
        %v529 = vpop.xlane.xlu0 %528
        %vm530 = vcmp.eq.f32.partialorder %v527, %v529
        %v531 = vsel %vm530, %v526, inf
        %532 = vmin.xlane.f32.xlu0 %v531
        %v533 = vpop.xlane.xlu0 %532
        %v534 = vcvt.f32.s32 %v533
        %v535 = vcvt.f32.s32 %v529
        %v536 = vshll.u32 %v535, 16
        %v537 = vadd.s32 %v536, %v534
        %v538 = vsel %vm269, %v466, 2147483647
        %v539 = vand.u32 %v538, 65535
        %v540 = vshra.s32 %v538, 16
        %v541 = vcvt.s32.f32 %v539
        %v542 = vcvt.s32.f32 %v540
        %543 = vmin.xlane.f32.xlu0 %v542
        %v544 = vpop.xlane.xlu0 %543
        %vm545 = vcmp.eq.f32.partialorder %v542, %v544
        %v546 = vsel %vm545, %v541, inf
        %547 = vmin.xlane.f32.xlu0 %v546
        %v548 = vpop.xlane.xlu0 %547
        %v549 = vcvt.f32.s32 %v548
        %v550 = vcvt.f32.s32 %v544
        %v551 = vshll.u32 %v550, 16
        %v552 = vadd.s32 %v551, %v549
        %v553 = vsel %vm269, %v467, 2147483647
        %v554 = vand.u32 %v553, 65535
        %v555 = vshra.s32 %v553, 16
        %v556 = vcvt.s32.f32 %v554
        %v557 = vcvt.s32.f32 %v555
        %558 = vmin.xlane.f32.xlu0 %v557
        %v559 = vpop.xlane.xlu0 %558
        %vm560 = vcmp.eq.f32.partialorder %v557, %v559
        %v561 = vsel %vm560, %v556, inf
        %562 = vmin.xlane.f32.xlu0 %v561
        %v563 = vpop.xlane.xlu0 %562
        %v564 = vcvt.f32.s32 %v563
        %v565 = vcvt.f32.s32 %v559
        %v566 = vshll.u32 %v565, 16
        %v567 = vadd.s32 %v566, %v564
        %v568 = vsel %vm269, %v468, 2147483647
        %v569 = vand.u32 %v568, 65535
        %v570 = vshra.s32 %v568, 16
        %v571 = vcvt.s32.f32 %v569
        %v572 = vcvt.s32.f32 %v570
        %573 = vmin.xlane.f32.xlu0 %v572
        %v574 = vpop.xlane.xlu0 %573
        %vm575 = vcmp.eq.f32.partialorder %v572, %v574
        %v576 = vsel %vm575, %v571, inf
        %577 = vmin.xlane.f32.xlu0 %v576
        %v578 = vpop.xlane.xlu0 %577
        %v579 = vcvt.f32.s32 %v578
        %v580 = vcvt.f32.s32 %v574
        %v581 = vshll.u32 %v580, 16
        %v582 = vadd.s32 %v581, %v579
        %v583 = vsel %vm269, %v469, 2147483647
        %v584 = vand.u32 %v583, 65535
        %v585 = vshra.s32 %v583, 16
        %v586 = vcvt.s32.f32 %v584
        %v587 = vcvt.s32.f32 %v585
        %588 = vmin.xlane.f32.xlu0 %v587
        %v589 = vpop.xlane.xlu0 %588
        %vm590 = vcmp.eq.f32.partialorder %v587, %v589
        %v591 = vsel %vm590, %v586, inf
        %592 = vmin.xlane.f32.xlu0 %v591
        %v593 = vpop.xlane.xlu0 %592
        %v594 = vcvt.f32.s32 %v593
        %v595 = vcvt.f32.s32 %v589
        %v596 = vshll.u32 %v595, 16
        %v597 = vadd.s32 %v596, %v594
        %v598 = vsel %vm269, %v470, 2147483647
        %v599 = vand.u32 %v598, 65535
        %v600 = vshra.s32 %v598, 16
        %v601 = vcvt.s32.f32 %v599
        %v602 = vcvt.s32.f32 %v600
        %603 = vmin.xlane.f32.xlu0 %v602
        %v604 = vpop.xlane.xlu0 %603
        %vm605 = vcmp.eq.f32.partialorder %v602, %v604
        %v606 = vsel %vm605, %v601, inf
        %607 = vmin.xlane.f32.xlu0 %v606
        %v608 = vpop.xlane.xlu0 %607
        %v609 = vcvt.f32.s32 %v608
        %v610 = vcvt.f32.s32 %v604
        %v611 = vshll.u32 %v610, 16
        %v612 = vadd.s32 %v611, %v609
        %v613 = vsel %vm269, %v471, 2147483647
        %v614 = vand.u32 %v613, 65535
        %v615 = vshra.s32 %v613, 16
        %v616 = vcvt.s32.f32 %v614
        %v617 = vcvt.s32.f32 %v615
        %618 = vmin.xlane.f32.xlu0 %v617
        %v619 = vpop.xlane.xlu0 %618
        %vm620 = vcmp.eq.f32.partialorder %v617, %v619
        %v621 = vsel %vm620, %v616, inf
        %622 = vmin.xlane.f32.xlu0 %v621
        %v623 = vpop.xlane.xlu0 %622
        %v624 = vcvt.f32.s32 %v623
        %v625 = vcvt.f32.s32 %v619
        %v626 = vshll.u32 %v625, 16
        %v627 = vadd.s32 %v626, %v624
        %v628 = vsel %vm269, %v472, 2147483647
        %v629 = vand.u32 %v628, 65535
        %v630 = vshra.s32 %v628, 16
        %v631 = vcvt.s32.f32 %v629
        %v632 = vcvt.s32.f32 %v630
        %633 = vmin.xlane.f32.xlu0 %v632
        %v634 = vpop.xlane.xlu0 %633
        %vm635 = vcmp.eq.f32.partialorder %v632, %v634
        %v636 = vsel %vm635, %v631, inf
        %637 = vmin.xlane.f32.xlu0 %v636
        %v638 = vpop.xlane.xlu0 %637
        %v639 = vcvt.f32.s32 %v638
        %v640 = vcvt.f32.s32 %v634
        %v641 = vshll.u32 %v640, 16
        %v642 = vadd.s32 %v641, %v639
        %v643 = vsel %vm269, %v473, 2147483647
        %v644 = vand.u32 %v643, 65535
        %v645 = vshra.s32 %v643, 16
        %v646 = vcvt.s32.f32 %v644
        %v647 = vcvt.s32.f32 %v645
        %648 = vmin.xlane.f32.xlu0 %v647
        %v649 = vpop.xlane.xlu0 %648
        %vm650 = vcmp.eq.f32.partialorder %v647, %v649
        %v651 = vsel %vm650, %v646, inf
        %652 = vmin.xlane.f32.xlu0 %v651
        %v653 = vpop.xlane.xlu0 %652
        %v654 = vcvt.f32.s32 %v653
        %v655 = vcvt.f32.s32 %v649
        %v656 = vshll.u32 %v655, 16
        %v657 = vadd.s32 %v656, %v654
        %v658 = vsel %vm269, %v474, 2147483647
        %v659 = vand.u32 %v658, 65535
        %v660 = vshra.s32 %v658, 16
        %v661 = vcvt.s32.f32 %v659
        %v662 = vcvt.s32.f32 %v660
        %663 = vmin.xlane.f32.xlu0 %v662
        %v664 = vpop.xlane.xlu0 %663
        %vm665 = vcmp.eq.f32.partialorder %v662, %v664
        %v666 = vsel %vm665, %v661, inf
        %667 = vmin.xlane.f32.xlu0 %v666
        %v668 = vpop.xlane.xlu0 %667
        %v669 = vcvt.f32.s32 %v668
        %v670 = vcvt.f32.s32 %v664
        %v671 = vshll.u32 %v670, 16
        %v672 = vadd.s32 %v671, %v669
        %v673 = vsel %vm269, %v475, 2147483647
        %v674 = vand.u32 %v673, 65535
        %v675 = vshra.s32 %v673, 16
        %v676 = vcvt.s32.f32 %v674
        %v677 = vcvt.s32.f32 %v675
        %678 = vmin.xlane.f32.xlu0 %v677
        %v679 = vpop.xlane.xlu0 %678
        %vm680 = vcmp.eq.f32.partialorder %v677, %v679
        %v681 = vsel %vm680, %v676, inf
        %682 = vmin.xlane.f32.xlu0 %v681
        %v683 = vpop.xlane.xlu0 %682
        %v684 = vcvt.f32.s32 %v683
        %v685 = vcvt.f32.s32 %v679
        %v686 = vshll.u32 %v685, 16
        %v687 = vadd.s32 %v686, %v684
        %v688 = vsel %vm269, %v476, 2147483647
        %v689 = vand.u32 %v688, 65535
        %v690 = vshra.s32 %v688, 16
        %v691 = vcvt.s32.f32 %v689
        %v692 = vcvt.s32.f32 %v690
        %693 = vmin.xlane.f32.xlu0 %v692
        %v694 = vpop.xlane.xlu0 %693
        %vm695 = vcmp.eq.f32.partialorder %v692, %v694
        %v696 = vsel %vm695, %v691, inf
        %697 = vmin.xlane.f32.xlu0 %v696
        %v698 = vpop.xlane.xlu0 %697
        %v699 = vcvt.f32.s32 %v698
        %v700 = vcvt.f32.s32 %v694
        %v701 = vshll.u32 %v700, 16
        %v702 = vadd.s32 %v701, %v699
        %v703 = vsel %vm269, %v477, 2147483647
        %v704 = vand.u32 %v703, 65535
        %v705 = vshra.s32 %v703, 16
        %v706 = vcvt.s32.f32 %v704
        %v707 = vcvt.s32.f32 %v705
        %708 = vmin.xlane.f32.xlu0 %v707
        %v709 = vpop.xlane.xlu0 %708
        %vm710 = vcmp.eq.f32.partialorder %v707, %v709
        %v711 = vsel %vm710, %v706, inf
        %712 = vmin.xlane.f32.xlu0 %v711
        %v713 = vpop.xlane.xlu0 %712
        %v714 = vcvt.f32.s32 %v713
        %v715 = vcvt.f32.s32 %v709
        %v716 = vshll.u32 %v715, 16
        %v717 = vadd.s32 %v716, %v714
        %vm718 = vcmp.eq.s32.totalorder %v492, %v253
        %vm719 = vcmp.eq.s32.totalorder %v507, %v254
        %vm720 = vcmp.eq.s32.totalorder %v522, %v255
        %vm721 = vcmp.eq.s32.totalorder %v537, %v256
        %vm722 = vcmp.eq.s32.totalorder %v552, %v257
        %vm723 = vcmp.eq.s32.totalorder %v567, %v258
        %vm724 = vcmp.eq.s32.totalorder %v582, %v259
        %vm725 = vcmp.eq.s32.totalorder %v597, %v260
        %vm726 = vcmp.eq.s32.totalorder %v612, %v261
        %vm727 = vcmp.eq.s32.totalorder %v627, %v262
        %vm728 = vcmp.eq.s32.totalorder %v642, %v263
        %vm729 = vcmp.eq.s32.totalorder %v657, %v264
        %vm730 = vcmp.eq.s32.totalorder %v672, %v265
        %vm731 = vcmp.eq.s32.totalorder %v687, %v266
        %vm732 = vcmp.eq.s32.totalorder %v702, %v267
        %vm733 = vcmp.eq.s32.totalorder %v717, %v268
        %v734 = vsel %vm718, 1, 0
        %v735 = vsel %vm719, 1, 0
        %v736 = vsel %vm720, 1, 0
        %v737 = vsel %vm721, 1, 0
        %v738 = vsel %vm722, 1, 0
        %v739 = vsel %vm723, 1, 0
        %v740 = vsel %vm724, 1, 0
        %v741 = vsel %vm725, 1, 0
        %v742 = vsel %vm726, 1, 0
        %v743 = vsel %vm727, 1, 0
        %v744 = vsel %vm728, 1, 0
        %v745 = vsel %vm729, 1, 0
        %v746 = vsel %vm730, 1, 0
        %v747 = vsel %vm731, 1, 0
        %v748 = vsel %vm732, 1, 0
        %v749 = vsel %vm733, 1, 0
        %v750 = vcvt.s32.f32 %v734
        %v751 = vcvt.s32.f32 %v735
        %v752 = vcvt.s32.f32 %v736
        %v753 = vcvt.s32.f32 %v737
        %v754 = vcvt.s32.f32 %v738
        %v755 = vcvt.s32.f32 %v739
        %v756 = vcvt.s32.f32 %v740
        %v757 = vcvt.s32.f32 %v741
        %v758 = vcvt.s32.f32 %v742
        %v759 = vcvt.s32.f32 %v743
        %v760 = vcvt.s32.f32 %v744
        %v761 = vcvt.s32.f32 %v745
        %v762 = vcvt.s32.f32 %v746
        %v763 = vcvt.s32.f32 %v747
        %v764 = vcvt.s32.f32 %v748
        %v765 = vcvt.s32.f32 %v749
        %v766 = vlaneseq
        %v767 = vshrl.u32 %v766, 7
        %v768 = vadd.s32 %v767, 8
        %v769 = vadd.s32 %v767, 16
        %v770 = vadd.s32 %v767, 24
        %v771 = vadd.s32 %v767, 32
        %v772 = vadd.s32 %v767, 40
        %v773 = vadd.s32 %v767, 48
        %v774 = vadd.s32 %v767, 56
        %v775 = vadd.s32 %v767, 64
        %v776 = vadd.s32 %v767, 72
        %v777 = vadd.s32 %v767, 80
        %v778 = vadd.s32 %v767, 88
        %v779 = vadd.s32 %v767, 96
        %v780 = vadd.s32 %v767, 104
        %v781 = vadd.s32 %v767, 112
        %v782 = vadd.s32 %v767, 120
        %s783 = sadd.s32 %s236, 0
        %v784 = vstv %s783
        %v785 = vadd.s32 %v784, %v767
        %v786 = vadd.s32 %v784, %v768
        %v787 = vadd.s32 %v784, %v769
        %v788 = vadd.s32 %v784, %v770
        %v789 = vadd.s32 %v784, %v771
        %v790 = vadd.s32 %v784, %v772
        %v791 = vadd.s32 %v784, %v773
        %v792 = vadd.s32 %v784, %v774
        %v793 = vadd.s32 %v784, %v775
        %v794 = vadd.s32 %v784, %v776
        %v795 = vadd.s32 %v784, %v777
        %v796 = vadd.s32 %v784, %v778
        %v797 = vadd.s32 %v784, %v779
        %v798 = vadd.s32 %v784, %v780
        %v799 = vadd.s32 %v784, %v781
        %v800 = vadd.s32 %v784, %v782
        %vm801 = vcmp.lt.s32.totalorder %v785, 256
        %vm802 = vcmp.lt.s32.totalorder %v786, 256
        %vm803 = vcmp.lt.s32.totalorder %v787, 256
        %vm804 = vcmp.lt.s32.totalorder %v788, 256
        %vm805 = vcmp.lt.s32.totalorder %v789, 256
        %vm806 = vcmp.lt.s32.totalorder %v790, 256
        %vm807 = vcmp.lt.s32.totalorder %v791, 256
        %vm808 = vcmp.lt.s32.totalorder %v792, 256
        %vm809 = vcmp.lt.s32.totalorder %v793, 256
        %vm810 = vcmp.lt.s32.totalorder %v794, 256
        %vm811 = vcmp.lt.s32.totalorder %v795, 256
        %vm812 = vcmp.lt.s32.totalorder %v796, 256
        %vm813 = vcmp.lt.s32.totalorder %v797, 256
        %vm814 = vcmp.lt.s32.totalorder %v798, 256
        %vm815 = vcmp.lt.s32.totalorder %v799, 256
        %vm816 = vcmp.lt.s32.totalorder %v800, 256
        %v817 = vsel %vm801, %v415, -1.0
        %v818 = vsel %vm802, %v417, -1.0
        %v819 = vsel %vm803, %v419, -1.0
        %v820 = vsel %vm804, %v421, -1.0
        %v821 = vsel %vm805, %v423, -1.0
        %v822 = vsel %vm806, %v425, -1.0
        %v823 = vsel %vm807, %v427, -1.0
        %v824 = vsel %vm808, %v429, -1.0
        %v825 = vsel %vm809, %v431, -1.0
        %v826 = vsel %vm810, %v433, -1.0
        %v827 = vsel %vm811, %v435, -1.0
        %v828 = vsel %vm812, %v437, -1.0
        %v829 = vsel %vm813, %v439, -1.0
        %v830 = vsel %vm814, %v441, -1.0
        %v831 = vsel %vm815, %v443, -1.0
        %v832 = vsel %vm816, %v445, -1.0
        %vm833 = vcmp.gt.f32.partialorder %v817, %v231
        %vm834 = vcmp.gt.f32.partialorder %v818, %v231
        %vm835 = vcmp.gt.f32.partialorder %v819, %v231
        %vm836 = vcmp.gt.f32.partialorder %v820, %v231
        %vm837 = vcmp.gt.f32.partialorder %v821, %v231
        %vm838 = vcmp.gt.f32.partialorder %v822, %v231
        %vm839 = vcmp.gt.f32.partialorder %v823, %v231
        %vm840 = vcmp.gt.f32.partialorder %v824, %v231
        %vm841 = vcmp.gt.f32.partialorder %v825, %v231
        %vm842 = vcmp.gt.f32.partialorder %v826, %v231
        %vm843 = vcmp.gt.f32.partialorder %v827, %v231
        %vm844 = vcmp.gt.f32.partialorder %v828, %v231
        %vm845 = vcmp.gt.f32.partialorder %v829, %v231
        %vm846 = vcmp.gt.f32.partialorder %v830, %v231
        %vm847 = vcmp.gt.f32.partialorder %v831, %v231
        %vm848 = vcmp.gt.f32.partialorder %v832, %v231
        %vm849 = vcmp.le.f32.partialorder %v817, %v234
        %vm850 = vcmp.le.f32.partialorder %v818, %v234
        %vm851 = vcmp.le.f32.partialorder %v819, %v234
        %vm852 = vcmp.le.f32.partialorder %v820, %v234
        %vm853 = vcmp.le.f32.partialorder %v821, %v234
        %vm854 = vcmp.le.f32.partialorder %v822, %v234
        %vm855 = vcmp.le.f32.partialorder %v823, %v234
        %vm856 = vcmp.le.f32.partialorder %v824, %v234
        %vm857 = vcmp.le.f32.partialorder %v825, %v234
        %vm858 = vcmp.le.f32.partialorder %v826, %v234
        %vm859 = vcmp.le.f32.partialorder %v827, %v234
        %vm860 = vcmp.le.f32.partialorder %v828, %v234
        %vm861 = vcmp.le.f32.partialorder %v829, %v234
        %vm862 = vcmp.le.f32.partialorder %v830, %v234
        %vm863 = vcmp.le.f32.partialorder %v831, %v234
        %vm864 = vcmp.le.f32.partialorder %v832, %v234
        %vm865 = vmand %vm833, %vm849
        %vm866 = vmand %vm834, %vm850
        %vm867 = vmand %vm835, %vm851
        %vm868 = vmand %vm836, %vm852
        %vm869 = vmand %vm837, %vm853
        %vm870 = vmand %vm838, %vm854
        %vm871 = vmand %vm839, %vm855
        %vm872 = vmand %vm840, %vm856
        %vm873 = vmand %vm841, %vm857
        %vm874 = vmand %vm842, %vm858
        %vm875 = vmand %vm843, %vm859
        %vm876 = vmand %vm844, %vm860
        %vm877 = vmand %vm845, %vm861
        %vm878 = vmand %vm846, %vm862
        %vm879 = vmand %vm847, %vm863
        %vm880 = vmand %vm848, %vm864
        %v881 = vsel %vm865, 1, 0
        %v882 = vsel %vm866, 1, 0
        %v883 = vsel %vm867, 1, 0
        %v884 = vsel %vm868, 1, 0
        %v885 = vsel %vm869, 1, 0
        %v886 = vsel %vm870, 1, 0
        %v887 = vsel %vm871, 1, 0
        %v888 = vsel %vm872, 1, 0
        %v889 = vsel %vm873, 1, 0
        %v890 = vsel %vm874, 1, 0
        %v891 = vsel %vm875, 1, 0
        %v892 = vsel %vm876, 1, 0
        %v893 = vsel %vm877, 1, 0
        %v894 = vsel %vm878, 1, 0
        %v895 = vsel %vm879, 1, 0
        %v896 = vsel %vm880, 1, 0
        %v897 = vcvt.s32.f32 %v881
        %v898 = vcvt.s32.f32 %v882
        %v899 = vcvt.s32.f32 %v883
        %v900 = vcvt.s32.f32 %v884
        %v901 = vcvt.s32.f32 %v885
        %v902 = vcvt.s32.f32 %v886
        %v903 = vcvt.s32.f32 %v887
        %v904 = vcvt.s32.f32 %v888
        %v905 = vcvt.s32.f32 %v889
        %v906 = vcvt.s32.f32 %v890
        %v907 = vcvt.s32.f32 %v891
        %v908 = vcvt.s32.f32 %v892
        %v909 = vcvt.s32.f32 %v893
        %v910 = vcvt.s32.f32 %v894
        %v911 = vcvt.s32.f32 %v895
        %v912 = vcvt.s32.f32 %v896
        %v913 = vpack.c.bf16 %v818, %v817
        %v914 = vpack.c.bf16 %v820, %v819
        %v915 = vpack.c.bf16 %v822, %v821
        %v916 = vpack.c.bf16 %v824, %v823
        %v917 = vpack.c.bf16 %v826, %v825
        %v918 = vpack.c.bf16 %v828, %v827
        %v919 = vpack.c.bf16 %v830, %v829
        %v920 = vpack.c.bf16 %v832, %v831
        %v921 = vunpack.c.l.bf16 %v913
        %v922 = vunpack.c.h.bf16 %v913
        %v923 = vunpack.c.l.bf16 %v914
        %v924 = vunpack.c.h.bf16 %v914
        %v925 = vunpack.c.l.bf16 %v915
        %v926 = vunpack.c.h.bf16 %v915
        %v927 = vunpack.c.l.bf16 %v916
        %v928 = vunpack.c.h.bf16 %v916
        %v929 = vunpack.c.l.bf16 %v917
        %v930 = vunpack.c.h.bf16 %v917
        %v931 = vunpack.c.l.bf16 %v918
        %v932 = vunpack.c.h.bf16 %v918
        %v933 = vunpack.c.l.bf16 %v919
        %v934 = vunpack.c.h.bf16 %v919
        %v935 = vunpack.c.l.bf16 %v920
        %v936 = vunpack.c.h.bf16 %v920
        %v937 = vsub.f32 %v817, %v921
        %v938 = vsub.f32 %v818, %v922
        %v939 = vsub.f32 %v819, %v923
        %v940 = vsub.f32 %v820, %v924
        %v941 = vsub.f32 %v821, %v925
        %v942 = vsub.f32 %v822, %v926
        %v943 = vsub.f32 %v823, %v927
        %v944 = vsub.f32 %v824, %v928
        %v945 = vsub.f32 %v825, %v929
        %v946 = vsub.f32 %v826, %v930
        %v947 = vsub.f32 %v827, %v931
        %v948 = vsub.f32 %v828, %v932
        %v949 = vsub.f32 %v829, %v933
        %v950 = vsub.f32 %v830, %v934
        %v951 = vsub.f32 %v831, %v935
        %v952 = vsub.f32 %v832, %v936
        %vm953 = vcmp.eq.s32.totalorder %v226, 0
        %vm954 = vcmp.eq.s32.totalorder %v226, 1
        %vm955 = vcmp.eq.s32.totalorder %v226, 2
        %vm956 = vcmp.eq.s32.totalorder %v226, 3
        %v957 = vsel %vm956, %v937, 0.0
        %v958 = vsel %vm956, %v938, 0.0
        %v959 = vsel %vm956, %v939, 0.0
        %v960 = vsel %vm956, %v940, 0.0
        %v961 = vsel %vm956, %v941, 0.0
        %v962 = vsel %vm956, %v942, 0.0
        %v963 = vsel %vm956, %v943, 0.0
        %v964 = vsel %vm956, %v944, 0.0
        %v965 = vsel %vm956, %v945, 0.0
        %v966 = vsel %vm956, %v946, 0.0
        %v967 = vsel %vm956, %v947, 0.0
        %v968 = vsel %vm956, %v948, 0.0
        %v969 = vsel %vm956, %v949, 0.0
        %v970 = vsel %vm956, %v950, 0.0
        %v971 = vsel %vm956, %v951, 0.0
        %v972 = vsel %vm956, %v952, 0.0
        %974 = vset.pattern.permute.xlu0 0
        %975 = vperm.xlu0 %974, %v750
        %v976 = vpop.permute.xlu0 %975
        %979 = vset.pattern.permute.xlu0 0
        %980 = vperm.xlu0 %979, %v751
        %v981 = vpop.permute.xlu0 %980
        %984 = vset.pattern.permute.xlu0 0
        %985 = vperm.xlu0 %984, %v752
        %v986 = vpop.permute.xlu0 %985
        %989 = vset.pattern.permute.xlu0 0
        %990 = vperm.xlu0 %989, %v753
        %v991 = vpop.permute.xlu0 %990
        %994 = vset.pattern.permute.xlu0 0
        %995 = vperm.xlu0 %994, %v754
        %v996 = vpop.permute.xlu0 %995
        %999 = vset.pattern.permute.xlu0 0
        %1000 = vperm.xlu0 %999, %v755
        %v1001 = vpop.permute.xlu0 %1000
        %1004 = vset.pattern.permute.xlu0 0
        %1005 = vperm.xlu0 %1004, %v756
        %v1006 = vpop.permute.xlu0 %1005
        %1009 = vset.pattern.permute.xlu0 0
        %1010 = vperm.xlu0 %1009, %v757
        %v1011 = vpop.permute.xlu0 %1010
        %1014 = vset.pattern.permute.xlu0 0
        %1015 = vperm.xlu0 %1014, %v758
        %v1016 = vpop.permute.xlu0 %1015
        %1019 = vset.pattern.permute.xlu0 0
        %1020 = vperm.xlu0 %1019, %v759
        %v1021 = vpop.permute.xlu0 %1020
        %1024 = vset.pattern.permute.xlu0 0
        %1025 = vperm.xlu0 %1024, %v760
        %v1026 = vpop.permute.xlu0 %1025
        %1029 = vset.pattern.permute.xlu0 0
        %1030 = vperm.xlu0 %1029, %v761
        %v1031 = vpop.permute.xlu0 %1030
        %1034 = vset.pattern.permute.xlu0 0
        %1035 = vperm.xlu0 %1034, %v762
        %v1036 = vpop.permute.xlu0 %1035
        %1039 = vset.pattern.permute.xlu0 0
        %1040 = vperm.xlu0 %1039, %v763
        %v1041 = vpop.permute.xlu0 %1040
        %1044 = vset.pattern.permute.xlu0 0
        %1045 = vperm.xlu0 %1044, %v764
        %v1046 = vpop.permute.xlu0 %1045
        %1049 = vset.pattern.permute.xlu0 0
        %1050 = vperm.xlu0 %1049, %v765
        %v1051 = vpop.permute.xlu0 %1050
        %v1053 = vsel %vm955, %v976, %v957
        %v1054 = vsel %vm955, %v981, %v958
        %v1055 = vsel %vm955, %v986, %v959
        %v1056 = vsel %vm955, %v991, %v960
        %v1057 = vsel %vm955, %v996, %v961
        %v1058 = vsel %vm955, %v1001, %v962
        %v1059 = vsel %vm955, %v1006, %v963
        %v1060 = vsel %vm955, %v1011, %v964
        %v1061 = vsel %vm955, %v1016, %v965
        %v1062 = vsel %vm955, %v1021, %v966
        %v1063 = vsel %vm955, %v1026, %v967
        %v1064 = vsel %vm955, %v1031, %v968
        %v1065 = vsel %vm955, %v1036, %v969
        %v1066 = vsel %vm955, %v1041, %v970
        %v1067 = vsel %vm955, %v1046, %v971
        %v1068 = vsel %vm955, %v1051, %v972
        %v1069 = vsel %vm954, %v921, %v1053
        %v1070 = vsel %vm954, %v922, %v1054
        %v1071 = vsel %vm954, %v923, %v1055
        %v1072 = vsel %vm954, %v924, %v1056
        %v1073 = vsel %vm954, %v925, %v1057
        %v1074 = vsel %vm954, %v926, %v1058
        %v1075 = vsel %vm954, %v927, %v1059
        %v1076 = vsel %vm954, %v928, %v1060
        %v1077 = vsel %vm954, %v929, %v1061
        %v1078 = vsel %vm954, %v930, %v1062
        %v1079 = vsel %vm954, %v931, %v1063
        %v1080 = vsel %vm954, %v932, %v1064
        %v1081 = vsel %vm954, %v933, %v1065
        %v1082 = vsel %vm954, %v934, %v1066
        %v1083 = vsel %vm954, %v935, %v1067
        %v1084 = vsel %vm954, %v936, %v1068
        %v1085 = vsel %vm953, 1.0, %v1069
        %v1086 = vsel %vm953, 1.0, %v1070
        %v1087 = vsel %vm953, 1.0, %v1071
        %v1088 = vsel %vm953, 1.0, %v1072
        %v1089 = vsel %vm953, 1.0, %v1073
        %v1090 = vsel %vm953, 1.0, %v1074
        %v1091 = vsel %vm953, 1.0, %v1075
        %v1092 = vsel %vm953, 1.0, %v1076
        %v1093 = vsel %vm953, 1.0, %v1077
        %v1094 = vsel %vm953, 1.0, %v1078
        %v1095 = vsel %vm953, 1.0, %v1079
        %v1096 = vsel %vm953, 1.0, %v1080
        %v1097 = vsel %vm953, 1.0, %v1081
        %v1098 = vsel %vm953, 1.0, %v1082
        %v1099 = vsel %vm953, 1.0, %v1083
        %v1100 = vsel %vm953, 1.0, %v1084
        %1101 = vxpose.xlu0.b32.start [1/16] %v1085, 128
        %1102 = vxpose.xlu0.b32.cont [2/16] %v1086, 128
        %1103 = vxpose.xlu0.b32.cont [3/16] %v1087, 128
        %1104 = vxpose.xlu0.b32.cont [4/16] %v1088, 128
        %1105 = vxpose.xlu0.b32.cont [5/16] %v1089, 128
        %1106 = vxpose.xlu0.b32.cont [6/16] %v1090, 128
        %1107 = vxpose.xlu0.b32.cont [7/16] %v1091, 128
        %1108 = vxpose.xlu0.b32.cont [8/16] %v1092, 128
        %1109 = vxpose.xlu0.b32.cont [9/16] %v1093, 128
        %1110 = vxpose.xlu0.b32.cont [10/16] %v1094, 128
        %1111 = vxpose.xlu0.b32.cont [11/16] %v1095, 128
        %1112 = vxpose.xlu0.b32.cont [12/16] %v1096, 128
        %1113 = vxpose.xlu0.b32.cont [13/16] %v1097, 128
        %1114 = vxpose.xlu0.b32.cont [14/16] %v1098, 128
        %1115 = vxpose.xlu0.b32.cont [15/16] %v1099, 128
        %1116 = vxpose.xlu0.b32.end [16/16] %v1100, 128
        %v1117 = vpop.trf.xlu0
        %v1118 = vpop.trf.xlu0
        %v1119 = vpop.trf.xlu0
        %v1120 = vpop.trf.xlu0
        %v1121 = vpop.trf.xlu0
        %v1122 = vpop.trf.xlu0
        %v1123 = vpop.trf.xlu0
        %v1124 = vpop.trf.xlu0
        %v1125 = vpop.trf.xlu0
        %v1126 = vpop.trf.xlu0
        %v1127 = vpop.trf.xlu0
        %v1128 = vpop.trf.xlu0
        %v1129 = vpop.trf.xlu0
        %v1130 = vpop.trf.xlu0
        %v1131 = vpop.trf.xlu0
        %v1132 = vpop.trf.xlu0
        %1133 = vmatprep.subr.mxu0 0.0
        %1134 = vmatpush1.msra.mxu0 %v897
        %1135 = vmatprep.subr.mxu0 0.0
        %1136 = vmatpush1.msra.mxu0 %v898
        %1137 = vmatprep.subr.mxu0 0.0
        %1138 = vmatpush1.msra.mxu0 %v899
        %1139 = vmatprep.subr.mxu0 0.0
        %1140 = vmatpush1.msra.mxu0 %v900
        %1141 = vmatprep.subr.mxu0 0.0
        %1142 = vmatpush1.msra.mxu0 %v901
        %1143 = vmatprep.subr.mxu0 0.0
        %1144 = vmatpush1.msra.mxu0 %v902
        %1145 = vmatprep.subr.mxu0 0.0
        %1146 = vmatpush1.msra.mxu0 %v903
        %1147 = vmatprep.subr.mxu0 0.0
        %1148 = vmatpush1.msra.mxu0 %v904
        %1149 = vmatprep.subr.mxu0 0.0
        %1150 = vmatpush1.msra.mxu0 %v905
        %1151 = vmatprep.subr.mxu0 0.0
        %1152 = vmatpush1.msra.mxu0 %v906
        %1153 = vmatprep.subr.mxu0 0.0
        %1154 = vmatpush1.msra.mxu0 %v907
        %1155 = vmatprep.subr.mxu0 0.0
        %1156 = vmatpush1.msra.mxu0 %v908
        %1157 = vmatprep.subr.mxu0 0.0
        %1158 = vmatpush1.msra.mxu0 %v909
        %1159 = vmatprep.subr.mxu0 0.0
        %1160 = vmatpush1.msra.mxu0 %v910
        %1161 = vmatprep.subr.mxu0 0.0
        %1162 = vmatpush1.msra.mxu0 %v911
        %1163 = vmatprep.subr.mxu0 0.0
        %1164 = vmatpush1.msra.mxu0 %v912
        %1165 = vmatprep.subr.mxu0 0.0
        %1166 = vmatpush1.msra.mxu0 0.0
        %1167 = vmatprep.subr.mxu0 0.0
        %1168 = vmatpush1.msra.mxu0 0.0
        %1169 = vmatprep.subr.mxu0 0.0
        %1170 = vmatpush1.msra.mxu0 0.0
        %1171 = vmatprep.subr.mxu0 0.0
        %1172 = vmatpush1.msra.mxu0 0.0
        %1173 = vmatprep.subr.mxu0 0.0
        %1174 = vmatpush1.msra.mxu0 0.0
        %1175 = vmatprep.subr.mxu0 0.0
        %1176 = vmatpush1.msra.mxu0 0.0
        %1177 = vmatprep.subr.mxu0 0.0
        %1178 = vmatpush1.msra.mxu0 0.0
        %1179 = vmatprep.subr.mxu0 0.0
        %1180 = vmatpush1.msra.mxu0 0.0
        %1181 = vmatprep.subr.mxu0 0.0
        %1182 = vmatpush1.msra.mxu0 0.0
        %1183 = vmatprep.subr.mxu0 0.0
        %1184 = vmatpush1.msra.mxu0 0.0
        %1185 = vmatprep.subr.mxu0 0.0
        %1186 = vmatpush1.msra.mxu0 0.0
        %1187 = vmatprep.subr.mxu0 0.0
        %1188 = vmatpush1.msra.mxu0 0.0
        %1189 = vmatprep.subr.mxu0 0.0
        %1190 = vmatpush1.msra.mxu0 0.0
        %1191 = vmatprep.subr.mxu0 0.0
        %1192 = vmatpush1.msra.mxu0 0.0
        %1193 = vmatprep.subr.mxu0 0.0
        %1194 = vmatpush1.msra.mxu0 0.0
        %1195 = vmatprep.subr.mxu0 0.0
        %1196 = vmatpush1.msra.mxu0 0.0
        %1197 = vmatprep.mubr.f32.mxu0 0.0
        %1198 = vmatmul.mubr.f32.gmra.mrb[0].mxu0 %v1117
        %v1199 = vpop.f32.mrb[0].mxu0
        %v1200 = vadd.f32 0.0, %v1199
        %v1201 = vpop.f32.mrb[0].mxu0
        %1202 = vdwg.mxu0
        %v1203 = vld [vmem:[%s195] sm:$0xff]
        %v1204 = vadd.f32 %v1203, %v1200
        %1205 = vst [vmem:[%s195] sm:$0xff] %v1204
        %s1206 = sand.u32 %s100, 1
        %s1207 = scalar_lea.sflag [#allocation3], %s1206
        %s1208 = sand.u32 %s100, 1
        %s1209 = smul.addr %s1208, 8
        %s1210 = scalar_lea.vmem [#allocation2], %s1209
        // Predicated region
        $region33: #{tpu_custom_call.1} parent=27 // pred_check
          %p1211 = pneg %p110
        $region34: #{tpu_custom_call.1} parent=27 // pred_check_branch
          %1213 = sbr.rel (%p1211) target = $region36
        $region35: #{tpu_custom_call.1} parent=27 // pred_region
          %s1215 = ssub.s32 128, 128
          %1216 = vsyncadd %s1207, %s1215
          %s1217 = smul.addr %s20, 128
          %s1218 = scalar_lea.hbm %s2, %s1217
          %s1220 = sshll.u32 %s1210, 4
          %s1221 = int_to_ptr.vmem [resolvable:$true] %s1220
          %1223 = dma.vmem_to_hbm [thread:$0]  %s1221, 128, %s1218, %s1207
        $region36: #{tpu_custom_call.1} parent=27 // pred_fallthru
          _
      $region28: #{tpu_custom_call.1} parent=5 // pred_fallthru
        _
      %p1224 = scmp.le.s32.totalorder 2, %s11
      // Predicated region
      $region37: #{tpu_custom_call.1} parent=5 // pred_check
        %p1225 = pneg %p1224
      $region38: #{tpu_custom_call.1} parent=5 // pred_check_branch
        %1227 = sbr.rel (%p1225) target = $region40
      $region39: #{tpu_custom_call.1} parent=5 // pred_region
        %s1228 = ssub.s32 %s11, 2
        // Predicated region
        $region41: #{tpu_custom_call.1} parent=39 // pred_check
          %p1229 = pneg %p116
        $region42: #{tpu_custom_call.1} parent=39 // pred_check_branch
          %1231 = sbr.rel (%p1229) target = $region44
        $region43: #{tpu_custom_call.1} parent=39 // pred_region
          %s1232 = sand.u32 %s101, 1
          %s1233 = scalar_lea.sflag [#allocation3], %s1232
          %s1234 = sand.u32 %s101, 1
          %s1235 = smul.addr %s1234, 8
          %s1236 = scalar_lea.vmem [#allocation2], %s1235
          %1237 = dma.done %s1233, 128
        $region44: #{tpu_custom_call.1} parent=39 // pred_fallthru
          _
      $region40: #{tpu_custom_call.1} parent=5 // pred_fallthru
        _
    $region6: #{tpu_custom_call.1} parent=1 // loop_footer
      %s15 = sadd.s32 1, %s11
    $region7: #{tpu_custom_call.1} parent=1 // loop_footer_branch
      %10 = sbr.rel target = $region3
    $region8: #{tpu_custom_call.1} parent=1 // loop_exit
      _
    %1238 = vsyncpa [#allocation3], 1
    %s1239 = scalar_lea.sflag [#allocation3], 1
    %1240 = vsyncpa %s1239, 1

</llo_original>
